<compile_context>
chip_gen: v7x
topology: tpu7x:2x2x1
jax: 0.10.0
libtpu: 0.0.40
codegen_flags: <defaults>
</compile_context>

<pallas_src>
import functools
import math

import jax
import jax.numpy as jnp
from jax.experimental import pallas as pl
from jax.experimental.pallas import tpu as pltpu

NEG_INF = float("-inf")


# ------------------------------ tiling helper ------------------------------

def _choose_tile(dim, target, quantum):
    """Largest multiple of `quantum` that divides `dim` and is <= target,
    falling back to the full dimension (legal: block == full array dim)."""
    if dim <= target:
        return dim
    t = (target // quantum) * quantum
    while t >= quantum:
        if dim % t == 0:
            return t
        t -= quantum
    return dim


# ----------------------------- Pallas kernels -----------------------------

def _matmul_kernel(x_ref, w_ref, b_ref, o_ref, acc_ref, *, activation):
    k = pl.program_id(2)

    @pl.when(k == 0)
    def _():
        acc_ref[...] = jnp.zeros_like(acc_ref)

    acc_ref[...] += jnp.dot(x_ref[...], w_ref[...],
                            preferred_element_type=jnp.float32)

    @pl.when(k == pl.num_programs(2) - 1)
    def _():
        y = acc_ref[...] + b_ref[...].astype(jnp.float32)
        if activation == "gelu":
            # TODO(synk): tanh-approximate GELU; exact erf-GELU (PyTorch BERT
            # default) differs slightly.
            y = jax.nn.gelu(y, approximate=True)
        o_ref[...] = y.astype(o_ref.dtype)


def linear(x, w, b, activation=None, tm=256, tn=256, tk=512):
    """x: (N, K), w: (K, Cout), b: (Cout,) -> (N, Cout). Tiled MXU matmul."""
    n, kdim = x.shape
    cout = w.shape[1]
    tm = _choose_tile(n, tm, 8)
    tn = _choose_tile(cout, tn, 128)
    tk = _choose_tile(kdim, tk, 128)
    grid = (n // tm, cout // tn, kdim // tk)
    return pl.pallas_call(
        functools.partial(_matmul_kernel, activation=activation),
        grid_spec=pltpu.PrefetchScalarGridSpec(
            num_scalar_prefetch=0,
            grid=grid,
            in_specs=[
                pl.BlockSpec((tm, tk), lambda i, j, k: (i, k)),
                pl.BlockSpec((tk, tn), lambda i, j, k: (k, j)),
                pl.BlockSpec((1, tn), lambda i, j, k: (0, j)),
            ],
            out_specs=pl.BlockSpec((tm, tn), lambda i, j, k: (i, j)),
            scratch_shapes=[pltpu.VMEM((tm, tn), jnp.float32)],
        ),
        out_shape=jax.ShapeDtypeStruct((n, cout), x.dtype),
        compiler_params=pltpu.CompilerParams(
            dimension_semantics=("parallel", "parallel", "arbitrary")),
    )(x, w, b.reshape(1, cout))


def _add_layernorm_kernel(x_ref, r_ref, g_ref, b_ref, o_ref, *, eps):
    x = x_ref[...].astype(jnp.float32) + r_ref[...].astype(jnp.float32)
    mean = jnp.mean(x, axis=-1, keepdims=True)
    var = jnp.mean(jnp.square(x - mean), axis=-1, keepdims=True)
    y = (x - mean) * jax.lax.rsqrt(var + eps)
    o_ref[...] = (y * g_ref[...].astype(jnp.float32)
                  + b_ref[...].astype(jnp.float32)).astype(o_ref.dtype)


def add_layernorm(x, res, gamma, beta, eps=1e-12, rows_target=512):
    """LayerNorm(x + res), row-tiled."""
    n, h = x.shape
    rows = _choose_tile(n, rows_target, 8)
    return pl.pallas_call(
        functools.partial(_add_layernorm_kernel, eps=eps),
        grid=(n // rows,),
        in_specs=[
            pl.BlockSpec((rows, h), lambda i: (i, 0)),
            pl.BlockSpec((rows, h), lambda i: (i, 0)),
            pl.BlockSpec((1, h), lambda i: (0, 0)),
            pl.BlockSpec((1, h), lambda i: (0, 0)),
        ],
        out_specs=pl.BlockSpec((rows, h), lambda i: (i, 0)),
        out_shape=jax.ShapeDtypeStruct((n, h), x.dtype),
        compiler_params=pltpu.CompilerParams(dimension_semantics=("parallel",)),
    )(x, res, gamma.reshape(1, h), beta.reshape(1, h))


def _attention_kernel(qkv_ref, mask_ref, o_ref, *, num_heads, head_dim, scale):
    """One batch element per grid step; all heads handled in-kernel."""
    qkv = qkv_ref[0]                          # (L, 3H), native dtype
    mask = mask_ref[0].astype(jnp.float32)    # (L, L) additive (0 / -inf)
    hdim = num_heads * head_dim
    outs = []
    for h in range(num_heads):
        lo = h * head_dim
        q = qkv[:, lo:lo + head_dim]
        k = qkv[:, hdim + lo:hdim + lo + head_dim]
        v = qkv[:, 2 * hdim + lo:2 * hdim + lo + head_dim]
        # q @ k^T via transposed-RHS contraction (no explicit transpose).
        s = jax.lax.dot_general(q, k, (((1,), (1,)), ((), ())),
                                preferred_element_type=jnp.float32)
        s = s * scale + mask
        s = s - jnp.max(s, axis=-1, keepdims=True)
        p = jnp.exp(s)
        denom = jnp.sum(p, axis=-1, keepdims=True)
        p = p * pl.reciprocal(denom, approx=True)
        ctx = jnp.dot(p.astype(v.dtype), v, preferred_element_type=jnp.float32)
        outs.append(ctx)
    # Lane-dense (L, H) store.
    o_ref[0] = jnp.concatenate(outs, axis=-1).astype(o_ref.dtype)


def multihead_attention(qkv, mask, num_heads, head_dim, scale):
    """qkv: (B, L, 3H), mask: (B, L, L) additive -> (B, L, H)."""
    B, L, three_h = qkv.shape
    H = num_heads * head_dim
    return pl.pallas_call(
        functools.partial(_attention_kernel, num_heads=num_heads,
                          head_dim=head_dim, scale=scale),
        grid=(B,),
        in_specs=[
            pl.BlockSpec((1, L, three_h), lambda b: (b, 0, 0)),
            pl.BlockSpec((1, L, L), lambda b: (b, 0, 0)),
        ],
        out_specs=pl.BlockSpec((1, L, H), lambda b: (b, 0, 0)),
        out_shape=jax.ShapeDtypeStruct((B, L, H), qkv.dtype),
        compiler_params=pltpu.CompilerParams(dimension_semantics=("parallel",)),
    )(qkv, mask)


# --------------------------- synthetic BERT encoder ---------------------------

def init_bert_encoder_params(key, num_layers, hidden, intermediate):
    params = []
    for _ in range(num_layers):
        key, *ks = jax.random.split(key, 5)

        def w(k, shape):
            return (0.02 * jax.random.normal(k, shape)).astype(jnp.float32)

        params.append(dict(
            qkv_w=w(ks[0], (hidden, 3 * hidden)),
            qkv_b=jnp.zeros((3 * hidden,), jnp.float32),
            o_w=w(ks[1], (hidden, hidden)), o_b=jnp.zeros((hidden,), jnp.float32),
            ln1_g=jnp.ones((hidden,), jnp.float32),
            ln1_b=jnp.zeros((hidden,), jnp.float32),
            ff1_w=w(ks[2], (hidden, intermediate)),
            ff1_b=jnp.zeros((intermediate,), jnp.float32),
            ff2_w=w(ks[3], (intermediate, hidden)),
            ff2_b=jnp.zeros((hidden,), jnp.float32),
            ln2_g=jnp.ones((hidden,), jnp.float32),
            ln2_b=jnp.zeros((hidden,), jnp.float32),
        ))
    return params


def bert_encoder_forward(params, hidden_states, attention_mask, num_heads):
    """hidden_states: (B, L, H); attention_mask: (B, L, L) additive."""
    B, L, H = hidden_states.shape
    d = H // num_heads
    scale = 1.0 / math.sqrt(d)

    x2d = hidden_states.reshape(B * L, H)
    for layer in params:
        qkv = linear(x2d, layer["qkv_w"], layer["qkv_b"])          # (B*L, 3H)
        ctx = multihead_attention(qkv.reshape(B, L, 3 * H),
                                  attention_mask, num_heads, d, scale)
        attn_out = linear(ctx.reshape(B * L, H), layer["o_w"], layer["o_b"])
        x2d = add_layernorm(attn_out, x2d, layer["ln1_g"], layer["ln1_b"])
        ff = linear(x2d, layer["ff1_w"], layer["ff1_b"], activation="gelu")
        ff = linear(ff, layer["ff2_w"], layer["ff2_b"])
        x2d = add_layernorm(ff, x2d, layer["ln2_g"], layer["ln2_b"])
    return (x2d.reshape(B, L, H),)


# --------------------------- BertEncoderAsDecoder ---------------------------

def bert_encoder_as_decoder_forward(params, tgt, memory, tgt_mask, num_heads,
                                    tgt_key_padding_mask=None,
                                    memory_key_padding_mask=None,
                                    tgt_bi_valid_mask=None,
                                    encoder_history_states=None):
    assert tgt_key_padding_mask is None, "not supported"
    assert tgt_mask.ndim == 2 and tgt_mask.shape[0] == tgt_mask.shape[1]

    tgt_b = jnp.transpose(tgt, (1, 0, 2))        # (B, T, H)
    memory_b = jnp.transpose(memory, (1, 0, 2))  # (B, M, H)
    hidden_states = jnp.concatenate((memory_b, tgt_b), axis=1)
    num_tgt = tgt_b.shape[1]
    num_memory = memory_b.shape[1]
    L = num_memory + num_tgt
    dtype = tgt.dtype

    top_left = jnp.zeros((num_memory, num_memory), dtype=dtype)
    top_right = jnp.full((num_memory, num_tgt), NEG_INF, dtype=dtype)
    bottom_left = jnp.zeros((num_tgt, num_memory), dtype=dtype)
    left = jnp.concatenate((top_left, bottom_left), axis=0)
    right = jnp.concatenate((top_right, tgt_mask.astype(dtype)), axis=0)
    full_attention_mask = jnp.concatenate((left, right), axis=1)[None, :]

    if memory_key_padding_mask is None:
        memory_key_padding_mask = jnp.zeros(
            (memory_b.shape[0], memory_b.shape[1]), dtype=bool)
    assert memory_key_padding_mask.dtype == jnp.bool_
    zero_negative_infinity = jnp.where(
        memory_key_padding_mask,
        jnp.asarray(NEG_INF, dtype),
        jnp.zeros(memory_key_padding_mask.shape, dtype=dtype))

    # (B, L, L) — kept per-batch, shared over heads inside the attention kernel
    # (never broadcast to (B*num_heads, L, L)).
    full_attention_mask = jnp.broadcast_to(
        full_attention_mask, (memory_key_padding_mask.shape[0], L, L))
    origin_left = full_attention_mask[:, :, :num_memory]
    update = zero_negative_infinity[:, None, :]
    full_attention_mask = jnp.concatenate(
        (origin_left + update, full_attention_mask[:, :, num_memory:]), axis=2)

    if tgt_bi_valid_mask is not None:
        max_valid_target = tgt_bi_valid_mask.shape[1]
        seg = full_attention_mask[:, :, num_memory:num_memory + max_valid_target]
        seg = jnp.where(tgt_bi_valid_mask[:, None, :], jnp.zeros_like(seg), seg)
        full_attention_mask = jnp.concatenate(
            (full_attention_mask[:, :, :num_memory], seg,
             full_attention_mask[:, :, num_memory + max_valid_target:]), axis=2)

    if encoder_history_states is None:
        result = bert_encoder_forward(params, hidden_states,
                                      full_attention_mask, num_heads)
        # (B, L, H) -> drop memory rows -> (T, B, H)
        return jnp.transpose(result[0][:, num_memory:], (1, 0, 2))
    else:
        # TODO(synk): incremental decoding via encoder_history_states not implemented.
        raise NotImplementedError("encoder_history_states path not implemented")


# ----------------------------------- main -----------------------------------

if __name__ == "__main__":
    B, T, M, H = 2, 8, 4, 32
    num_heads, intermediate, num_layers = 4, 64, 2

    key = jax.random.PRNGKey(0)
    k_tgt, k_mem, k_params = jax.random.split(key, 3)

    tgt = jax.random.normal(k_tgt, (T, B, H), dtype=jnp.float32)       # (T, B, H)
    memory = jax.random.normal(k_mem, (M, B, H), dtype=jnp.float32)    # (M, B, H)

    # causal additive mask: 0 where allowed, -inf above the diagonal
    causal = jnp.where(jnp.tril(jnp.ones((T, T), dtype=bool)), 0.0, NEG_INF)
    causal = causal.astype(jnp.float32)

    # one padded memory position in batch element 1
    mem_pad = jnp.zeros((B, M), dtype=bool).at[1, M - 1].set(True)

    params = init_bert_encoder_params(k_params, num_layers, H, intermediate)

    out = bert_encoder_as_decoder_forward(
        params, tgt, memory, causal, num_heads,
        memory_key_padding_mask=mem_pad)
    out = jax.block_until_ready(out)

    assert out.shape == (T, B, H), out.shape
    assert bool(jnp.all(jnp.isfinite(out)))
    print("KERNEL_OK")
</pallas_src>

<mosaic_0001>
module attributes {stable_mosaic.version = 11 : i64} {
  func.func @_matmul_kernel(%arg0: i32, %arg1: i32, %arg2: i32, %arg3: memref<24x32xf32, #tpu.memory_space<vmem>>, %arg4: memref<32x96xf32, #tpu.memory_space<vmem>>, %arg5: memref<1x96xf32, #tpu.memory_space<vmem>>, %arg6: memref<24x96xf32, #tpu.memory_space<vmem>>, %arg7: memref<24x96xf32, #tpu.memory_space<vmem>>) attributes {dimension_semantics = [#tpu.dimension_semantics<parallel>, #tpu.dimension_semantics<parallel>, #tpu.dimension_semantics<arbitrary>], iteration_bounds = array<i64: 1, 1, 1>, scalar_prefetch = 0 : i64, scratch_operands = 1 : i64, tpu.core_type = #tpu.core_type<tc>, window_params = [{transform_indices = @transform_0, window_bounds = array<i64: 24, 32>}, {transform_indices = @transform_1, window_bounds = array<i64: 32, 96>}, {transform_indices = @transform_2, window_bounds = array<i64: 1, 96>}, {transform_indices = @transform_3, window_bounds = array<i64: 24, 96>}]} {
    %c0_i32 = arith.constant 0 : i32
    %0 = arith.cmpi eq, %arg2, %c0_i32 : i32
    %1 = arith.extui %0 : i1 to i32
    %c0_i32_0 = arith.constant 0 : i32
    %2 = arith.cmpi ne, %1, %c0_i32_0 : i32
    scf.if %2 {
      %cst_10 = arith.constant 0.000000e+00 : f32
      %12 = vector.broadcast %cst_10 : f32 to vector<24x96xf32>
      %c0_11 = arith.constant 0 : index
      %c0_12 = arith.constant 0 : index
      %13 = vector.load %arg7[%c0_11, %c0_12] : memref<24x96xf32, #tpu.memory_space<vmem>>, vector<24x96xf32>
      tpu.vector_store %arg7[%c0_11, %c0_12], %12 {strides = array<i32>} : memref<24x96xf32, #tpu.memory_space<vmem>>, vector<24x96xf32>,
    } else {
    }
    %c0 = arith.constant 0 : index
    %c0_1 = arith.constant 0 : index
    %3 = vector.load %arg7[%c0, %c0_1] : memref<24x96xf32, #tpu.memory_space<vmem>>, vector<24x96xf32>
    %c0_2 = arith.constant 0 : index
    %c0_3 = arith.constant 0 : index
    %4 = vector.load %arg3[%c0_2, %c0_3] : memref<24x32xf32, #tpu.memory_space<vmem>>, vector<24x32xf32>
    %c0_4 = arith.constant 0 : index
    %c0_5 = arith.constant 0 : index
    %5 = vector.load %arg4[%c0_4, %c0_5] : memref<32x96xf32, #tpu.memory_space<vmem>>, vector<32x96xf32>
    %cst = arith.constant dense<0.000000e+00> : vector<24x96xf32>
    %6 = tpu.matmul %4, %5, %cst {dimension_numbers = #tpu.dot_dimension_numbers<[1], [0], [0], [1], [0, 0, 1, 1], [], []>} : vector<24x32xf32>, vector<32x96xf32>, vector<24x96xf32> -> vector<24x96xf32>
    %7 = arith.addf %3, %6 : vector<24x96xf32>
    %c0_6 = arith.constant 0 : index
    %c0_7 = arith.constant 0 : index
    %8 = vector.load %arg7[%c0_6, %c0_7] : memref<24x96xf32, #tpu.memory_space<vmem>>, vector<24x96xf32>
    tpu.vector_store %arg7[%c0_6, %c0_7], %7 {strides = array<i32>} : memref<24x96xf32, #tpu.memory_space<vmem>>, vector<24x96xf32>,
    %c0_i32_8 = arith.constant 0 : i32
    %9 = arith.cmpi eq, %arg2, %c0_i32_8 : i32
    %10 = arith.extui %9 : i1 to i32
    %c0_i32_9 = arith.constant 0 : i32
    %11 = arith.cmpi ne, %10, %c0_i32_9 : i32
    scf.if %11 {
      %c0_10 = arith.constant 0 : index
      %c0_11 = arith.constant 0 : index
      %12 = vector.load %arg7[%c0_10, %c0_11] : memref<24x96xf32, #tpu.memory_space<vmem>>, vector<24x96xf32>
      %c0_12 = arith.constant 0 : index
      %c0_13 = arith.constant 0 : index
      %13 = vector.load %arg5[%c0_12, %c0_13] : memref<1x96xf32, #tpu.memory_space<vmem>>, vector<1x96xf32>
      %14 = vector.broadcast %13 : vector<1x96xf32> to vector<24x96xf32>
      %15 = arith.addf %12, %14 : vector<24x96xf32>
      %c0_14 = arith.constant 0 : index
      %c0_15 = arith.constant 0 : index
      %16 = vector.load %arg6[%c0_14, %c0_15] : memref<24x96xf32, #tpu.memory_space<vmem>>, vector<24x96xf32>
      tpu.vector_store %arg6[%c0_14, %c0_15], %15 {strides = array<i32>} : memref<24x96xf32, #tpu.memory_space<vmem>>, vector<24x96xf32>,
    } else {
    }
    return
  }
  func.func @transform_0(%arg0: i32, %arg1: i32, %arg2: i32) -> (i32, i32) {
    %c0_i32 = arith.constant 0 : i32
    return %arg0, %arg2 : i32, i32
  }
  func.func @transform_1(%arg0: i32, %arg1: i32, %arg2: i32) -> (i32, i32) {
    %c0_i32 = arith.constant 0 : i32
    return %arg2, %arg1 : i32, i32
  }
  func.func @transform_2(%arg0: i32, %arg1: i32, %arg2: i32) -> (i32, i32) {
    %c0_i32 = arith.constant 0 : i32
    %c0_i32_0 = arith.constant 0 : i32
    return %c0_i32, %arg1 : i32, i32
  }
  func.func @transform_3(%arg0: i32, %arg1: i32, %arg2: i32) -> (i32, i32) {
    %c0_i32 = arith.constant 0 : i32
    return %arg0, %arg1 : i32, i32
  }
}

</mosaic_0001>

<llo_original>
// kernel: tpu_custom_call.1
$region0: #{tpu_custom_call.1}
  #allocation0 [shape = 'u32[]', space=smem, size = 0x4, offset = 0x4, fixed_abs, tag = 'smem constant byte address 0x4 - core index']
  #allocation1 [shape = 'u32[144,128]{1,0:T(1,128)}', space=vmem, size = 0x12000, scoped, tag = 'internal scratch']
  #allocation2 [shape = 'f32[24,96]{1,0:T(8,128)}', space=vmem, size = 0x3000, scoped, tag = 'scratch operand']
  %s0 = inlined_call_operand.hbm [shape: f32[24,32], index: 0, kind: input, shape index: {}]
  %s1 = inlined_call_operand.hbm [shape: f32[32,96], index: 1, kind: input, shape index: {}]
  %s2 = inlined_call_operand.vmem [shape: f32[1,96], index: 2, kind: input, shape index: {}]
  %s3 = inlined_call_operand.hbm [shape: f32[24,96], index: 3, kind: output, shape index: {}]
  %s4 = sld [smem:[#allocation0]]
  $region38: #{tpu_custom_call.1} parent=0
    _
  %s6 = ssub.s32 1, %s4
  %s7 = scalar_select 0, %s6, %s4
  $region1: #{tpu_custom_call.1} parent=0
    #allocation3 [shape = 'u8[12288]{0}', space=vmem, size = 0x3000, scoped, tag = 'input window, operand 0, single buffered']
    #allocation4 [shape = 's32[1]{0}', space=sflag, size = 0x4, scoped, tag = 'scoped memory for tpu_custom_call.1']
    #allocation5 [shape = 's32[1]{0}', space=sflag, size = 0x4, scoped, tag = 'scoped memory for tpu_custom_call.1']
    #allocation6 [shape = 'u8[16384]{0}', space=vmem, size = 0x4000, scoped, tag = 'input window, operand 1, single buffered']
    #allocation7 [shape = 's32[1]{0}', space=sflag, size = 0x4, scoped, tag = 'scoped memory for tpu_custom_call.1']
    #allocation8 [shape = 'u8[12288]{0}', space=vmem, size = 0x3000, scoped, tag = 'output window, operand 0, single buffered']
    %8 = vsyncpa [#allocation4], 0
    %9 = vsyncpa [#allocation7], 0
    %10 = vsyncpa [#allocation5], 0
    // Predicated region
    $region2: #{tpu_custom_call.1} parent=1 // pred_check
      _
    $region3: #{tpu_custom_call.1} parent=1 // pred_check_branch
      %12 = sbr.rel (0) target = $region5
    $region4: #{tpu_custom_call.1} parent=1 // pred_region
      %s14 = ssub.s32 384, 384
      %15 = vsyncadd [#allocation4], %s14
      %s16 = sshll.u32 [#allocation3], 4
      %s17 = int_to_ptr.vmem [resolvable:$true] %s16
      %22 = dma.hbm_to_vmem [thread:$0]  %s0, 384, %s17, [#allocation4], 128, 128, 8
    $region5: #{tpu_custom_call.1} parent=1 // pred_fallthru
      _
    // Predicated region
    $region6: #{tpu_custom_call.1} parent=1 // pred_check
      _
    $region7: #{tpu_custom_call.1} parent=1 // pred_check_branch
      %24 = sbr.rel (0) target = $region9
    $region8: #{tpu_custom_call.1} parent=1 // pred_region
      %s26 = ssub.s32 512, 512
      %27 = vsyncadd [#allocation7], %s26
      %s28 = sshll.u32 [#allocation6], 4
      %s29 = int_to_ptr.vmem [resolvable:$true] %s28
      %34 = dma.hbm_to_vmem [thread:$0]  %s1, 512, %s29, [#allocation7], 128, 128, 8
    $region9: #{tpu_custom_call.1} parent=1 // pred_fallthru
      _
    // Predicated region
    $region10: #{tpu_custom_call.1} parent=1 // pred_check
      _
    $region11: #{tpu_custom_call.1} parent=1 // pred_check_branch
      %36 = sbr.rel (0) target = $region13
    $region12: #{tpu_custom_call.1} parent=1 // pred_region
      _
    $region13: #{tpu_custom_call.1} parent=1 // pred_fallthru
      _
    // Predicated region
    $region14: #{tpu_custom_call.1} parent=1 // pred_check
      _
    $region15: #{tpu_custom_call.1} parent=1 // pred_check_branch
      %38 = sbr.rel (0) target = $region17
    $region16: #{tpu_custom_call.1} parent=1 // pred_region
      %39 = dma.done [#allocation4], 384
    $region17: #{tpu_custom_call.1} parent=1 // pred_fallthru
      _
    // Predicated region
    $region18: #{tpu_custom_call.1} parent=1 // pred_check
      _
    $region19: #{tpu_custom_call.1} parent=1 // pred_check_branch
      %41 = sbr.rel (0) target = $region21
    $region20: #{tpu_custom_call.1} parent=1 // pred_region
      %42 = dma.done [#allocation7], 512
    $region21: #{tpu_custom_call.1} parent=1 // pred_fallthru
      _
    %p43 = scmp.eq.s32.totalorder 0, 0
    // Predicated region
    $region22: #{tpu_custom_call.1} parent=1 // pred_check
      %p44 = pneg %p43
    $region23: #{tpu_custom_call.1} parent=1 // pred_check_branch
      %46 = sbr.rel (%p44) target = $region25
    $region24: #{tpu_custom_call.1} parent=1 // pred_region
      %vm47 = vcmask 785408
      %48 = vst.msk [vmem:[#allocation2] sm:$0xff] %vm47, 0.0
      %49 = vst.msk [vmem:[#allocation2 + $0x8] sm:$0xff] %vm47, 0.0
      %50 = vst.msk [vmem:[#allocation2 + $0x10] sm:$0xff] %vm47, 0.0
    $region25: #{tpu_custom_call.1} parent=1 // pred_fallthru
      _
    %v51 = vld [vmem:[#allocation2] sm:$0xff]
    %v52 = vld [vmem:[#allocation2 + $0x8] sm:$0xff]
    %v53 = vld [vmem:[#allocation2 + $0x10] sm:$0xff]
    %v54 = vld [vmem:[#allocation3] sm:$0xff]
    %v55 = vld [vmem:[#allocation3 + $0x8] sm:$0xff]
    %v56 = vld [vmem:[#allocation3 + $0x10] sm:$0xff]
    %v57 = vld [vmem:[#allocation6] sm:$0xff]
    %v58 = vld [vmem:[#allocation6 + $0x8] sm:$0xff]
    %v59 = vld [vmem:[#allocation6 + $0x10] sm:$0xff]
    %v60 = vld [vmem:[#allocation6 + $0x18] sm:$0xff]
    %vm61 = vcmask 261120
    %v63 = vsel %vm61, %v54, 0
    %v66 = vsel %vm61, %v55, 0
    %v69 = vsel %vm61, %v56, 0
    %71 = vmatprep.subr.mxu0 0.0
    %72 = vmatpush1.msra.mxu0 %v57
    %73 = vmatprep.subr.mxu0 0.0
    %74 = vmatpush1.msra.mxu0 %v58
    %75 = vmatprep.subr.mxu0 0.0
    %76 = vmatpush1.msra.mxu0 %v59
    %77 = vmatprep.subr.mxu0 0.0
    %78 = vmatpush1.msra.mxu0 %v60
    %79 = vmatprep.subr.mxu0 0.0
    %80 = vmatpush1.msra.mxu0 0.0
    %81 = vmatprep.subr.mxu0 0.0
    %82 = vmatpush1.msra.mxu0 0.0
    %83 = vmatprep.subr.mxu0 0.0
    %84 = vmatpush1.msra.mxu0 0.0
    %85 = vmatprep.subr.mxu0 0.0
    %86 = vmatpush1.msra.mxu0 0.0
    %87 = vmatprep.subr.mxu0 0.0
    %88 = vmatpush1.msra.mxu0 0.0
    %89 = vmatprep.subr.mxu0 0.0
    %90 = vmatpush1.msra.mxu0 0.0
    %91 = vmatprep.subr.mxu0 0.0
    %92 = vmatpush1.msra.mxu0 0.0
    %93 = vmatprep.subr.mxu0 0.0
    %94 = vmatpush1.msra.mxu0 0.0
    %95 = vmatprep.subr.mxu0 0.0
    %96 = vmatpush1.msra.mxu0 0.0
    %97 = vmatprep.subr.mxu0 0.0
    %98 = vmatpush1.msra.mxu0 0.0
    %99 = vmatprep.subr.mxu0 0.0
    %100 = vmatpush1.msra.mxu0 0.0
    %101 = vmatprep.subr.mxu0 0.0
    %102 = vmatpush1.msra.mxu0 0.0
    %103 = vmatprep.subr.mxu0 0.0
    %104 = vmatpush1.msra.mxu0 0.0
    %105 = vmatprep.subr.mxu0 0.0
    %106 = vmatpush1.msra.mxu0 0.0
    %107 = vmatprep.subr.mxu0 0.0
    %108 = vmatpush1.msra.mxu0 0.0
    %109 = vmatprep.subr.mxu0 0.0
    %110 = vmatpush1.msra.mxu0 0.0
    %111 = vmatprep.subr.mxu0 0.0
    %112 = vmatpush1.msra.mxu0 0.0
    %113 = vmatprep.subr.mxu0 0.0
    %114 = vmatpush1.msra.mxu0 0.0
    %115 = vmatprep.subr.mxu0 0.0
    %116 = vmatpush1.msra.mxu0 0.0
    %117 = vmatprep.subr.mxu0 0.0
    %118 = vmatpush1.msra.mxu0 0.0
    %119 = vmatprep.subr.mxu0 0.0
    %120 = vmatpush1.msra.mxu0 0.0
    %121 = vmatprep.subr.mxu0 0.0
    %122 = vmatpush1.msra.mxu0 0.0
    %123 = vmatprep.subr.mxu0 0.0
    %124 = vmatpush1.msra.mxu0 0.0
    %125 = vmatprep.subr.mxu0 0.0
    %126 = vmatpush1.msra.mxu0 0.0
    %127 = vmatprep.subr.mxu0 0.0
    %128 = vmatpush1.msra.mxu0 0.0
    %129 = vmatprep.subr.mxu0 0.0
    %130 = vmatpush1.msra.mxu0 0.0
    %131 = vmatprep.subr.mxu0 0.0
    %132 = vmatpush1.msra.mxu0 0.0
    %133 = vmatprep.subr.mxu0 0.0
    %134 = vmatpush1.msra.mxu0 0.0
    %135 = vmatprep.mubr.f32.mxu0 0.0
    %136 = vmatmul.mubr.f32.gmra.mrb[0].mxu0 %v63
    %v137 = vpop.f32.mrb[0].mxu0
    %v138 = vadd.f32 0.0, %v137
    %v139 = vpop.f32.mrb[0].mxu0
    %140 = vmatprep.mubr.f32.mxu0 0.0
    %141 = vmatmul.mubr.f32.gmra.mrb[0].mxu0 %v66
    %v142 = vpop.f32.mrb[0].mxu0
    %v143 = vadd.f32 0.0, %v142
    %v144 = vpop.f32.mrb[0].mxu0
    %145 = vmatprep.mubr.f32.mxu0 0.0
    %146 = vmatmul.mubr.f32.gmra.mrb[0].mxu0 %v69
    %v147 = vpop.f32.mrb[0].mxu0
    %v148 = vadd.f32 0.0, %v147
    %v149 = vpop.f32.mrb[0].mxu0
    %150 = vdwg.mxu0
    %v151 = vadd.f32 %v51, %v138
    %v152 = vadd.f32 %v52, %v143
    %v153 = vadd.f32 %v53, %v148
    %vm154 = vcmask 785408
    %155 = vst.msk [vmem:[#allocation2] sm:$0xff] %vm154, %v151
    %156 = vst.msk [vmem:[#allocation2 + $0x8] sm:$0xff] %vm154, %v152
    %157 = vst.msk [vmem:[#allocation2 + $0x10] sm:$0xff] %vm154, %v153
    // Predicated region
    $region26: #{tpu_custom_call.1} parent=1 // pred_check
      %p158 = pneg %p43
    $region27: #{tpu_custom_call.1} parent=1 // pred_check_branch
      %160 = sbr.rel (%p158) target = $region29
    $region28: #{tpu_custom_call.1} parent=1 // pred_region
      %v161 = vld [vmem:[#allocation2] sm:$0xff]
      %v162 = vld [vmem:[#allocation2 + $0x8] sm:$0xff]
      %v163 = vld [vmem:[#allocation2 + $0x10] sm:$0xff]
      %v164 = vld [vmem:[%s2] sm:$0x1]
      %v166 = vlaneseq
      %v167 = vshrl.u32 %v166, 7
      %v168 = vsub.s32 0, %v167
      %v169 = vrot.slane %v164, %v168
      %v171 = vadd.f32 %v161, %v169
      %v172 = vadd.f32 %v162, %v169
      %v173 = vadd.f32 %v163, %v169
      %174 = vst.msk [vmem:[#allocation8] sm:$0xff] %vm154, %v171
      %175 = vst.msk [vmem:[#allocation8 + $0x8] sm:$0xff] %vm154, %v172
      %176 = vst.msk [vmem:[#allocation8 + $0x10] sm:$0xff] %vm154, %v173
    $region29: #{tpu_custom_call.1} parent=1 // pred_fallthru
      _
    // Predicated region
    $region30: #{tpu_custom_call.1} parent=1 // pred_check
      _
    $region31: #{tpu_custom_call.1} parent=1 // pred_check_branch
      %178 = sbr.rel (0) target = $region33
    $region32: #{tpu_custom_call.1} parent=1 // pred_region
      %s180 = ssub.s32 384, 384
      %181 = vsyncadd [#allocation5], %s180
      %s182 = sshll.u32 [#allocation8], 4
      %s183 = int_to_ptr.vmem [resolvable:$true] %s182
      %188 = dma.vmem_to_hbm [thread:$0]  %s183, 384, %s3, [#allocation5], 128, 128, 8
    $region33: #{tpu_custom_call.1} parent=1 // pred_fallthru
      _
    // Predicated region
    $region34: #{tpu_custom_call.1} parent=1 // pred_check
      _
    $region35: #{tpu_custom_call.1} parent=1 // pred_check_branch
      %190 = sbr.rel (0) target = $region37
    $region36: #{tpu_custom_call.1} parent=1 // pred_region
      %191 = dma.done [#allocation5], 384
    $region37: #{tpu_custom_call.1} parent=1 // pred_fallthru
      _
    %192 = vsyncpa [#allocation4], 1
    %193 = vsyncpa [#allocation7], 1
    %194 = vsyncpa [#allocation5], 1

</llo_original>
